<compile_context>
chip_gen: v7x
topology: tpu7x:2x2x1
jax: 0.10.0
libtpu: 0.0.40
codegen_flags: <defaults>
</compile_context>

<pallas_src>
import functools

import jax
import jax.numpy as jnp
from jax.experimental import pallas as pl
from jax.experimental.pallas import tpu as pltpu

N = 3
INPUT_SIZE = N          # 3
HIDDEN = 64
OUTPUT_SIZE = N ** 2    # 9
LANES = 128             # TPU lane width


def _round_up(x, m):
    return ((x + m - 1) // m) * m


def _simplenet_kernel(xT_ref, w1T_ref, b1_ref, w2T_ref, b2_ref, o_ref,
                      *, fc1_on_mxu):
    # Transposed layout: batch on the lane axis.
    xT = xT_ref[...]                                   # [3, TB]

    if fc1_on_mxu:
        # fc1 on the MXU: [64, 3] @ [3, TB].  MXU utilization is low (K=3) but
        # the MXU is otherwise idle except for fc2; this takes ~3/4 of the VALU
        # work off the saturated VPU slot.
        h = jnp.dot(w1T_ref[...], xT,
                    preferred_element_type=jnp.float32,
                    precision=jax.lax.Precision.HIGHEST)
    else:
        # VPU fallback: three broadcast FMAs (may win on v5e's weaker f32 MXU).
        w1T = w1T_ref[...]                             # [64, 3]
        h = (w1T[:, 0:1] * xT[0:1, :]
             + w1T[:, 1:2] * xT[1:2, :]
             + w1T[:, 2:3] * xT[2:3, :])               # [64, TB]

    h = jnp.maximum(h + b1_ref[...], 0.0)              # bias + ReLU on the VPU

    # fc2: [9, 64] @ [64, TB] on the MXU, full-f32 accumulation.
    y = jnp.dot(w2T_ref[...], h,
                preferred_element_type=jnp.float32,
                precision=jax.lax.Precision.HIGHEST)
    o_ref[...] = (y + b2_ref[...]).astype(o_ref.dtype)  # [9, TB], lane-dense


def simplenet_forward(x, w1, b1, w2, b2, *,
                      max_tile_b=16384, min_grid_steps=2, fc1_on_mxu=True):
    """x: [B, 3]; w1: [3, 64]; b1: [64]; w2: [64, 9]; b2: [9] -> [B, 9]."""
    B = x.shape[0]

    # --- batch tiling --------------------------------------------------------
    # Pad batch only to the lane width, then split into roughly equal
    # 128-aligned tiles capped at max_tile_b lanes.  Keep >= min_grid_steps
    # tiles when the batch allows it (two v7x TensorCores on the "parallel"
    # axis); padding waste is bounded by ~num_tiles*128 rows, not by max_tile_b.
    B128 = _round_up(max(B, 1), LANES)
    num_tiles = pl.cdiv(B128, max_tile_b)
    if B128 >= min_grid_steps * LANES:
        num_tiles = max(num_tiles, min_grid_steps)
    TB = _round_up(pl.cdiv(B128, num_tiles), LANES)
    Bp = num_tiles * TB

    # Lane-dense, batch-on-lane layout.
    xT = jnp.pad(x.astype(jnp.float32).T, ((0, 0), (0, Bp - B)))   # [3, Bp]
    w1T = w1.astype(jnp.float32).T                                 # [64, 3]
    b1c = b1.astype(jnp.float32).reshape(HIDDEN, 1)                # [64, 1]
    w2T = w2.astype(jnp.float32).T                                 # [9, 64]
    b2c = b2.astype(jnp.float32).reshape(OUTPUT_SIZE, 1)           # [9, 1]

    cost = pl.CostEstimate(
        flops=2 * Bp * (INPUT_SIZE * HIDDEN + HIDDEN * OUTPUT_SIZE),
        transcendentals=0,
        bytes_accessed=4 * (Bp * (INPUT_SIZE + OUTPUT_SIZE)
                            + INPUT_SIZE * HIDDEN + HIDDEN
                            + HIDDEN * OUTPUT_SIZE + OUTPUT_SIZE),
    )

    kernel = functools.partial(_simplenet_kernel, fc1_on_mxu=fc1_on_mxu)

    yT = pl.pallas_call(
        kernel,
        out_shape=jax.ShapeDtypeStruct((OUTPUT_SIZE, Bp), jnp.float32),
        grid_spec=pl.GridSpec(
            grid=(num_tiles,),
            in_specs=[
                # x^T: tiled along the (lane) batch axis.
                pl.BlockSpec((INPUT_SIZE, TB), lambda i: (0, i)),
                # Weights / biases: resident across all grid steps.
                pl.BlockSpec((HIDDEN, INPUT_SIZE), lambda i: (0, 0)),
                pl.BlockSpec((HIDDEN, 1), lambda i: (0, 0)),
                pl.BlockSpec((OUTPUT_SIZE, HIDDEN), lambda i: (0, 0)),
                pl.BlockSpec((OUTPUT_SIZE, 1), lambda i: (0, 0)),
            ],
            out_specs=pl.BlockSpec((OUTPUT_SIZE, TB), lambda i: (0, i)),
        ),
        compiler_params=pltpu.CompilerParams(
            dimension_semantics=("parallel",),
            vmem_limit_bytes=32 * 1024 * 1024,
            # Let XLA fuse the wrapper transpose/pad into the x^T operand
            # instead of a separate HBM round-trip.
            allow_input_fusion=[True, False, False, False, False],
        ),
        cost_estimate=cost,
    )(xT, w1T, b1c, w2T, b2c)

    return yT[:, :B].T                                             # [B, 9]


def init_params(key):
    # Deterministic init mimicking nn.Linear defaults: uniform(-1/sqrt(fan_in), +).
    k1, k2, k3, k4 = jax.random.split(key, 4)
    bound1 = 1.0 / jnp.sqrt(INPUT_SIZE)
    bound2 = 1.0 / jnp.sqrt(HIDDEN)
    w1 = jax.random.uniform(k1, (INPUT_SIZE, HIDDEN), jnp.float32, -bound1, bound1)
    b1 = jax.random.uniform(k2, (HIDDEN,), jnp.float32, -bound1, bound1)
    w2 = jax.random.uniform(k3, (HIDDEN, OUTPUT_SIZE), jnp.float32, -bound2, bound2)
    b2 = jax.random.uniform(k4, (OUTPUT_SIZE,), jnp.float32, -bound2, bound2)
    return w1, b1, w2, b2


if __name__ == "__main__":
    key = jax.random.PRNGKey(0)
    kx, kp = jax.random.split(key)
    B = 8
    x = jax.random.normal(kx, (B, INPUT_SIZE), jnp.float32)
    w1, b1, w2, b2 = init_params(kp)

    out = simplenet_forward(x, w1, b1, w2, b2)
    out = jax.block_until_ready(out)

    # Reference check (same math as the PyTorch forward), full-f32 matmuls so
    # both sides are bit-comparable at 1e-5.
    hi = jax.lax.Precision.HIGHEST
    ref_h = jnp.maximum(jnp.dot(x, w1, precision=hi) + b1, 0.0)
    ref = jnp.dot(ref_h, w2, precision=hi) + b2

    assert out.shape == (B, OUTPUT_SIZE)
    assert jnp.allclose(out, ref, atol=1e-5, rtol=1e-5)

    print("KERNEL_OK")
</pallas_src>

<mosaic_0001>
module attributes {stable_mosaic.version = 11 : i64} {
  func.func @_simplenet_kernel(%arg0: i32, %arg1: memref<3x128xf32, #tpu.memory_space<vmem>>, %arg2: memref<64x3xf32, #tpu.memory_space<vmem>>, %arg3: memref<64x1xf32, #tpu.memory_space<vmem>>, %arg4: memref<9x64xf32, #tpu.memory_space<vmem>>, %arg5: memref<9x1xf32, #tpu.memory_space<vmem>>, %arg6: memref<9x128xf32, #tpu.memory_space<vmem>>) attributes {dimension_semantics = [#tpu.dimension_semantics<parallel>], iteration_bounds = array<i64: 1>, scalar_prefetch = 0 : i64, scratch_operands = 0 : i64, tpu.core_type = #tpu.core_type<tc>, window_params = [{transform_indices = @transform_0, window_bounds = array<i64: 3, 128>}, {pipeline_mode = #tpu.pipeline_mode<synchronous>, transform_indices = @transform_1, window_bounds = array<i64: 64, 3>}, {pipeline_mode = #tpu.pipeline_mode<synchronous>, transform_indices = @transform_2, window_bounds = array<i64: 64, 1>}, {pipeline_mode = #tpu.pipeline_mode<synchronous>, transform_indices = @transform_3, window_bounds = array<i64: 9, 64>}, {pipeline_mode = #tpu.pipeline_mode<synchronous>, transform_indices = @transform_4, window_bounds = array<i64: 9, 1>}, {transform_indices = @transform_5, window_bounds = array<i64: 9, 128>}]} {
    %c0 = arith.constant 0 : index
    %c0_0 = arith.constant 0 : index
    %0 = vector.load %arg1[%c0, %c0_0] : memref<3x128xf32, #tpu.memory_space<vmem>>, vector<3x128xf32>
    %c0_1 = arith.constant 0 : index
    %c0_2 = arith.constant 0 : index
    %1 = vector.load %arg2[%c0_1, %c0_2] : memref<64x3xf32, #tpu.memory_space<vmem>>, vector<64x3xf32>
    %cst = arith.constant dense<0.000000e+00> : vector<64x128xf32>
    %2 = tpu.matmul %1, %0, %cst {dimension_numbers = #tpu.dot_dimension_numbers<[1], [0], [0], [1], [0, 0, 1, 1], [], []>, precision = #tpu.contract_precision<fp32>} : vector<64x3xf32>, vector<3x128xf32>, vector<64x128xf32> -> vector<64x128xf32>
    %c0_3 = arith.constant 0 : index
    %c0_4 = arith.constant 0 : index
    %3 = vector.load %arg3[%c0_3, %c0_4] : memref<64x1xf32, #tpu.memory_space<vmem>>, vector<64x1xf32>
    %4 = vector.broadcast %3 : vector<64x1xf32> to vector<64x128xf32>
    %5 = arith.addf %2, %4 : vector<64x128xf32>
    %cst_5 = arith.constant 0.000000e+00 : f32
    %6 = vector.broadcast %cst_5 : f32 to vector<64x128xf32>
    %7 = arith.maximumf %5, %6 : vector<64x128xf32>
    %c0_6 = arith.constant 0 : index
    %c0_7 = arith.constant 0 : index
    %8 = vector.load %arg4[%c0_6, %c0_7] : memref<9x64xf32, #tpu.memory_space<vmem>>, vector<9x64xf32>
    %cst_8 = arith.constant dense<0.000000e+00> : vector<9x128xf32>
    %9 = tpu.matmul %8, %7, %cst_8 {dimension_numbers = #tpu.dot_dimension_numbers<[1], [0], [0], [1], [0, 0, 1, 1], [], []>, precision = #tpu.contract_precision<fp32>} : vector<9x64xf32>, vector<64x128xf32>, vector<9x128xf32> -> vector<9x128xf32>
    %c0_9 = arith.constant 0 : index
    %c0_10 = arith.constant 0 : index
    %10 = vector.load %arg5[%c0_9, %c0_10] : memref<9x1xf32, #tpu.memory_space<vmem>>, vector<9x1xf32>
    %11 = vector.broadcast %10 : vector<9x1xf32> to vector<9x128xf32>
    %12 = arith.addf %9, %11 : vector<9x128xf32>
    %c0_11 = arith.constant 0 : index
    %c0_12 = arith.constant 0 : index
    %13 = vector.load %arg6[%c0_11, %c0_12] : memref<9x128xf32, #tpu.memory_space<vmem>>, vector<9x128xf32>
    tpu.vector_store %arg6[%c0_11, %c0_12], %12 {strides = array<i32>} : memref<9x128xf32, #tpu.memory_space<vmem>>, vector<9x128xf32>,
    return
  }
  func.func @transform_0(%arg0: i32) -> (i32, i32) {
    %c0_i32 = arith.constant 0 : i32
    %c0_i32_0 = arith.constant 0 : i32
    return %c0_i32, %arg0 : i32, i32
  }
  func.func @transform_1(%arg0: i32) -> (i32, i32) {
    %c0_i32 = arith.constant 0 : i32
    %c0_i32_0 = arith.constant 0 : i32
    %c0_i32_1 = arith.constant 0 : i32
    return %c0_i32, %c0_i32_0 : i32, i32
  }
  func.func @transform_2(%arg0: i32) -> (i32, i32) {
    %c0_i32 = arith.constant 0 : i32
    %c0_i32_0 = arith.constant 0 : i32
    %c0_i32_1 = arith.constant 0 : i32
    return %c0_i32, %c0_i32_0 : i32, i32
  }
  func.func @transform_3(%arg0: i32) -> (i32, i32) {
    %c0_i32 = arith.constant 0 : i32
    %c0_i32_0 = arith.constant 0 : i32
    %c0_i32_1 = arith.constant 0 : i32
    return %c0_i32, %c0_i32_0 : i32, i32
  }
  func.func @transform_4(%arg0: i32) -> (i32, i32) {
    %c0_i32 = arith.constant 0 : i32
    %c0_i32_0 = arith.constant 0 : i32
    %c0_i32_1 = arith.constant 0 : i32
    return %c0_i32, %c0_i32_0 : i32, i32
  }
  func.func @transform_5(%arg0: i32) -> (i32, i32) {
    %c0_i32 = arith.constant 0 : i32
    %c0_i32_0 = arith.constant 0 : i32
    return %c0_i32, %arg0 : i32, i32
  }
}

</mosaic_0001>

<llo_original>
// kernel: tpu_custom_call.1
$region0: #{tpu_custom_call.1}
  #allocation0 [shape = 'u32[]', space=smem, size = 0x4, offset = 0x4, fixed_abs, tag = 'smem constant byte address 0x4 - core index']
  #allocation1 [shape = 'u32[144,128]{1,0:T(1,128)}', space=vmem, size = 0x12000, scoped, tag = 'internal scratch']
  %s0 = inlined_call_operand.vmem [shape: f32[3,128], index: 0, kind: input, shape index: {}]
  %s1 = inlined_call_operand.vmem [shape: f32[64,3], index: 1, kind: input, shape index: {}]
  %s2 = inlined_call_operand.vmem [shape: f32[64,1], index: 2, kind: input, shape index: {}]
  %s3 = inlined_call_operand.vmem [shape: f32[9,64], index: 3, kind: input, shape index: {}]
  %s4 = inlined_call_operand.vmem [shape: f32[9,1], index: 4, kind: input, shape index: {}]
  %s5 = inlined_call_operand.hbm [shape: f32[9,128], index: 5, kind: output, shape index: {}]
  %s6 = sld [smem:[#allocation0]]
  $region30: #{tpu_custom_call.1} parent=0
    _
  %s8 = ssub.s32 1, %s6
  %s9 = scalar_select 0, %s8, %s6
  $region1: #{tpu_custom_call.1} parent=0
    #allocation2 [shape = 'u8[8192]{0}', space=vmem, size = 0x2000, scoped, tag = 'output window, operand 0, single buffered']
    #allocation3 [shape = 's32[1]{0}', space=sflag, size = 0x4, scoped, tag = 'scoped memory for tpu_custom_call.1']
    %10 = vsyncpa [#allocation3], 0
    // Predicated region
    $region2: #{tpu_custom_call.1} parent=1 // pred_check
      _
    $region3: #{tpu_custom_call.1} parent=1 // pred_check_branch
      %12 = sbr.rel (0) target = $region5
    $region4: #{tpu_custom_call.1} parent=1 // pred_region
      _
    $region5: #{tpu_custom_call.1} parent=1 // pred_fallthru
      _
    // Predicated region
    $region6: #{tpu_custom_call.1} parent=1 // pred_check
      _
    $region7: #{tpu_custom_call.1} parent=1 // pred_check_branch
      %14 = sbr.rel (0) target = $region9
    $region8: #{tpu_custom_call.1} parent=1 // pred_region
      _
    $region9: #{tpu_custom_call.1} parent=1 // pred_fallthru
      _
    // Predicated region
    $region10: #{tpu_custom_call.1} parent=1 // pred_check
      _
    $region11: #{tpu_custom_call.1} parent=1 // pred_check_branch
      %16 = sbr.rel (0) target = $region13
    $region12: #{tpu_custom_call.1} parent=1 // pred_region
      _
    $region13: #{tpu_custom_call.1} parent=1 // pred_fallthru
      _
    // Predicated region
    $region14: #{tpu_custom_call.1} parent=1 // pred_check
      _
    $region15: #{tpu_custom_call.1} parent=1 // pred_check_branch
      %18 = sbr.rel (0) target = $region17
    $region16: #{tpu_custom_call.1} parent=1 // pred_region
      _
    $region17: #{tpu_custom_call.1} parent=1 // pred_fallthru
      _
    // Predicated region
    $region18: #{tpu_custom_call.1} parent=1 // pred_check
      _
    $region19: #{tpu_custom_call.1} parent=1 // pred_check_branch
      %20 = sbr.rel (0) target = $region21
    $region20: #{tpu_custom_call.1} parent=1 // pred_region
      _
    $region21: #{tpu_custom_call.1} parent=1 // pred_fallthru
      _
    %v21 = vld [vmem:[%s0] sm:$0x7]
    %v22 = vld [vmem:[%s1] sm:$0xff]
    %v23 = vld [vmem:[%s1 + $0x8] sm:$0xff]
    %v24 = vld [vmem:[%s1 + $0x10] sm:$0xff]
    %v25 = vld [vmem:[%s1 + $0x18] sm:$0xff]
    %v26 = vld [vmem:[%s1 + $0x20] sm:$0xff]
    %v27 = vld [vmem:[%s1 + $0x28] sm:$0xff]
    %v28 = vld [vmem:[%s1 + $0x30] sm:$0xff]
    %v29 = vld [vmem:[%s1 + $0x38] sm:$0xff]
    %v30 = vld [vmem:[%s2] sm:$0xff]
    %v31 = vld [vmem:[%s2 + $0x8] sm:$0xff]
    %v32 = vld [vmem:[%s2 + $0x10] sm:$0xff]
    %v33 = vld [vmem:[%s2 + $0x18] sm:$0xff]
    %v34 = vld [vmem:[%s2 + $0x20] sm:$0xff]
    %v35 = vld [vmem:[%s2 + $0x28] sm:$0xff]
    %v36 = vld [vmem:[%s2 + $0x30] sm:$0xff]
    %v37 = vld [vmem:[%s2 + $0x38] sm:$0xff]
    %39 = vset.pattern.permute.xlu0 0
    %40 = vperm.xlu0 %39, %v30
    %v41 = vpop.permute.xlu0 %40
    %44 = vset.pattern.permute.xlu0 0
    %45 = vperm.xlu0 %44, %v31
    %v46 = vpop.permute.xlu0 %45
    %49 = vset.pattern.permute.xlu0 0
    %50 = vperm.xlu0 %49, %v32
    %v51 = vpop.permute.xlu0 %50
    %54 = vset.pattern.permute.xlu0 0
    %55 = vperm.xlu0 %54, %v33
    %v56 = vpop.permute.xlu0 %55
    %59 = vset.pattern.permute.xlu0 0
    %60 = vperm.xlu0 %59, %v34
    %v61 = vpop.permute.xlu0 %60
    %64 = vset.pattern.permute.xlu0 0
    %65 = vperm.xlu0 %64, %v35
    %v66 = vpop.permute.xlu0 %65
    %69 = vset.pattern.permute.xlu0 0
    %70 = vperm.xlu0 %69, %v36
    %v71 = vpop.permute.xlu0 %70
    %74 = vset.pattern.permute.xlu0 0
    %75 = vperm.xlu0 %74, %v37
    %v76 = vpop.permute.xlu0 %75
    %vm78 = vcmask 23552
    %v80 = vsel %vm78, %v22, 0
    %v83 = vsel %vm78, %v23, 0
    %v86 = vsel %vm78, %v24, 0
    %v89 = vsel %vm78, %v25, 0
    %v92 = vsel %vm78, %v26, 0
    %v95 = vsel %vm78, %v27, 0
    %v98 = vsel %vm78, %v28, 0
    %v101 = vsel %vm78, %v29, 0
    %vm103 = vcmask 1042432
    %v105 = vsel %vm103, %v21, 0
    %107 = vmatprep.subr.mxu0 0.0
    %v108 = vand.u32 %v105, 4294901760
    %109 = vmatpush1.msra.mxu0 %v108
    %110 = vmatprep.subr.mxu0 0.0
    %111 = vmatpush1.msra.mxu0 0.0
    %112 = vmatprep.subr.mxu0 0.0
    %113 = vmatpush1.msra.mxu0 0.0
    %114 = vmatprep.subr.mxu0 0.0
    %115 = vmatpush1.msra.mxu0 0.0
    %116 = vmatprep.subr.mxu0 0.0
    %117 = vmatpush1.msra.mxu0 0.0
    %118 = vmatprep.subr.mxu0 0.0
    %119 = vmatpush1.msra.mxu0 0.0
    %120 = vmatprep.subr.mxu0 0.0
    %121 = vmatpush1.msra.mxu0 0.0
    %122 = vmatprep.subr.mxu0 0.0
    %123 = vmatpush1.msra.mxu0 0.0
    %124 = vmatprep.subr.mxu0 0.0
    %125 = vmatpush1.msra.mxu0 0.0
    %126 = vmatprep.subr.mxu0 0.0
    %127 = vmatpush1.msra.mxu0 0.0
    %128 = vmatprep.subr.mxu0 0.0
    %129 = vmatpush1.msra.mxu0 0.0
    %130 = vmatprep.subr.mxu0 0.0
    %131 = vmatpush1.msra.mxu0 0.0
    %132 = vmatprep.subr.mxu0 0.0
    %133 = vmatpush1.msra.mxu0 0.0
    %134 = vmatprep.subr.mxu0 0.0
    %135 = vmatpush1.msra.mxu0 0.0
    %136 = vmatprep.subr.mxu0 0.0
    %137 = vmatpush1.msra.mxu0 0.0
    %138 = vmatprep.subr.mxu0 0.0
    %139 = vmatpush1.msra.mxu0 0.0
    %140 = vmatprep.subr.mxu0 0.0
    %141 = vmatpush1.msra.mxu0 0.0
    %142 = vmatprep.subr.mxu0 0.0
    %143 = vmatpush1.msra.mxu0 0.0
    %144 = vmatprep.subr.mxu0 0.0
    %145 = vmatpush1.msra.mxu0 0.0
    %146 = vmatprep.subr.mxu0 0.0
    %147 = vmatpush1.msra.mxu0 0.0
    %148 = vmatprep.subr.mxu0 0.0
    %149 = vmatpush1.msra.mxu0 0.0
    %150 = vmatprep.subr.mxu0 0.0
    %151 = vmatpush1.msra.mxu0 0.0
    %152 = vmatprep.subr.mxu0 0.0
    %153 = vmatpush1.msra.mxu0 0.0
    %154 = vmatprep.subr.mxu0 0.0
    %155 = vmatpush1.msra.mxu0 0.0
    %156 = vmatprep.subr.mxu0 0.0
    %157 = vmatpush1.msra.mxu0 0.0
    %158 = vmatprep.subr.mxu0 0.0
    %159 = vmatpush1.msra.mxu0 0.0
    %160 = vmatprep.subr.mxu0 0.0
    %161 = vmatpush1.msra.mxu0 0.0
    %162 = vmatprep.subr.mxu0 0.0
    %163 = vmatpush1.msra.mxu0 0.0
    %164 = vmatprep.subr.mxu0 0.0
    %165 = vmatpush1.msra.mxu0 0.0
    %166 = vmatprep.subr.mxu0 0.0
    %167 = vmatpush1.msra.mxu0 0.0
    %168 = vmatprep.subr.mxu0 0.0
    %169 = vmatpush1.msra.mxu0 0.0
    %170 = vmatprep.subr.mxu0 0.0
    %171 = vmatpush1.msra.mxu0 0.0
    %172 = vmatprep.mubr.f32.mxu0 0.0
    %v173 = vand.u32 %v80, 4294901760
    %v174 = vsub.f32 %v80, %v173
    %v175 = vand.u32 %v174, 4294901760
    %v176 = vsub.f32 %v174, %v175
    %v177 = vand.u32 %v176, 4294901760
    %178 = vmatmul.mubr.f32.gmra.mrb[0].mxu0 %v177
    %v179 = vpop.f32.mrb[0].mxu0
    %v180 = vadd.f32 %v41, %v179
    %v181 = vpop.f32.mrb[0].mxu0
    %182 = vmatprep.mubr.f32.mxu0 0.0
    %v183 = vand.u32 %v83, 4294901760
    %v184 = vsub.f32 %v83, %v183
    %v185 = vand.u32 %v184, 4294901760
    %v186 = vsub.f32 %v184, %v185
    %v187 = vand.u32 %v186, 4294901760
    %188 = vmatmul.mubr.f32.gmra.mrb[0].mxu0 %v187
    %v189 = vpop.f32.mrb[0].mxu0
    %v190 = vadd.f32 %v46, %v189
    %v191 = vpop.f32.mrb[0].mxu0
    %192 = vmatprep.mubr.f32.mxu0 0.0
    %v193 = vand.u32 %v86, 4294901760
    %v194 = vsub.f32 %v86, %v193
    %v195 = vand.u32 %v194, 4294901760
    %v196 = vsub.f32 %v194, %v195
    %v197 = vand.u32 %v196, 4294901760
    %198 = vmatmul.mubr.f32.gmra.mrb[0].mxu0 %v197
    %v199 = vpop.f32.mrb[0].mxu0
    %v200 = vadd.f32 %v51, %v199
    %v201 = vpop.f32.mrb[0].mxu0
    %202 = vmatprep.mubr.f32.mxu0 0.0
    %v203 = vand.u32 %v89, 4294901760
    %v204 = vsub.f32 %v89, %v203
    %v205 = vand.u32 %v204, 4294901760
    %v206 = vsub.f32 %v204, %v205
    %v207 = vand.u32 %v206, 4294901760
    %208 = vmatmul.mubr.f32.gmra.mrb[0].mxu0 %v207
    %v209 = vpop.f32.mrb[0].mxu0
    %v210 = vadd.f32 %v56, %v209
    %v211 = vpop.f32.mrb[0].mxu0
    %212 = vmatprep.mubr.f32.mxu0 0.0
    %v213 = vand.u32 %v92, 4294901760
    %v214 = vsub.f32 %v92, %v213
    %v215 = vand.u32 %v214, 4294901760
    %v216 = vsub.f32 %v214, %v215
    %v217 = vand.u32 %v216, 4294901760
    %218 = vmatmul.mubr.f32.gmra.mrb[0].mxu0 %v217
    %v219 = vpop.f32.mrb[0].mxu0
    %v220 = vadd.f32 %v61, %v219
    %v221 = vpop.f32.mrb[0].mxu0
    %222 = vmatprep.mubr.f32.mxu0 0.0
    %v223 = vand.u32 %v95, 4294901760
    %v224 = vsub.f32 %v95, %v223
    %v225 = vand.u32 %v224, 4294901760
    %v226 = vsub.f32 %v224, %v225
    %v227 = vand.u32 %v226, 4294901760
    %228 = vmatmul.mubr.f32.gmra.mrb[0].mxu0 %v227
    %v229 = vpop.f32.mrb[0].mxu0
    %v230 = vadd.f32 %v66, %v229
    %v231 = vpop.f32.mrb[0].mxu0
    %232 = vmatprep.mubr.f32.mxu0 0.0
    %v233 = vand.u32 %v98, 4294901760
    %v234 = vsub.f32 %v98, %v233
    %v235 = vand.u32 %v234, 4294901760
    %v236 = vsub.f32 %v234, %v235
    %v237 = vand.u32 %v236, 4294901760
    %238 = vmatmul.mubr.f32.gmra.mrb[0].mxu0 %v237
    %v239 = vpop.f32.mrb[0].mxu0
    %v240 = vadd.f32 %v71, %v239
    %v241 = vpop.f32.mrb[0].mxu0
    %242 = vmatprep.mubr.f32.mxu0 0.0
    %v243 = vand.u32 %v101, 4294901760
    %v244 = vsub.f32 %v101, %v243
    %v245 = vand.u32 %v244, 4294901760
    %v246 = vsub.f32 %v244, %v245
    %v247 = vand.u32 %v246, 4294901760
    %248 = vmatmul.mubr.f32.gmra.mrb[0].mxu0 %v247
    %v249 = vpop.f32.mrb[0].mxu0
    %v250 = vadd.f32 %v76, %v249
    %v251 = vpop.f32.mrb[0].mxu0
    %252 = vdwg.mxu0
    %253 = vmatprep.subr.mxu0 0.0
    %v254 = vand.u32 %v105, 4294901760
    %v255 = vsub.f32 %v105, %v254
    %v256 = vand.u32 %v255, 4294901760
    %v257 = vsub.f32 %v255, %v256
    %v258 = vand.u32 %v257, 4294901760
    %259 = vmatpush1.msra.mxu0 %v258
    %260 = vmatprep.subr.mxu0 0.0
    %261 = vmatpush1.msra.mxu0 0.0
    %262 = vmatprep.subr.mxu0 0.0
    %263 = vmatpush1.msra.mxu0 0.0
    %264 = vmatprep.subr.mxu0 0.0
    %265 = vmatpush1.msra.mxu0 0.0
    %266 = vmatprep.subr.mxu0 0.0
    %267 = vmatpush1.msra.mxu0 0.0
    %268 = vmatprep.subr.mxu0 0.0
    %269 = vmatpush1.msra.mxu0 0.0
    %270 = vmatprep.subr.mxu0 0.0
    %271 = vmatpush1.msra.mxu0 0.0
    %272 = vmatprep.subr.mxu0 0.0
    %273 = vmatpush1.msra.mxu0 0.0
    %274 = vmatprep.subr.mxu0 0.0
    %275 = vmatpush1.msra.mxu0 0.0
    %276 = vmatprep.subr.mxu0 0.0
    %277 = vmatpush1.msra.mxu0 0.0
    %278 = vmatprep.subr.mxu0 0.0
    %279 = vmatpush1.msra.mxu0 0.0
    %280 = vmatprep.subr.mxu0 0.0
    %281 = vmatpush1.msra.mxu0 0.0
    %282 = vmatprep.subr.mxu0 0.0
    %283 = vmatpush1.msra.mxu0 0.0
    %284 = vmatprep.subr.mxu0 0.0
    %285 = vmatpush1.msra.mxu0 0.0
    %286 = vmatprep.subr.mxu0 0.0
    %287 = vmatpush1.msra.mxu0 0.0
    %288 = vmatprep.subr.mxu0 0.0
    %289 = vmatpush1.msra.mxu0 0.0
    %290 = vmatprep.subr.mxu0 0.0
    %291 = vmatpush1.msra.mxu0 0.0
    %292 = vmatprep.subr.mxu0 0.0
    %293 = vmatpush1.msra.mxu0 0.0
    %294 = vmatprep.subr.mxu0 0.0
    %295 = vmatpush1.msra.mxu0 0.0
    %296 = vmatprep.subr.mxu0 0.0
    %297 = vmatpush1.msra.mxu0 0.0
    %298 = vmatprep.subr.mxu0 0.0
    %299 = vmatpush1.msra.mxu0 0.0
    %300 = vmatprep.subr.mxu0 0.0
    %301 = vmatpush1.msra.mxu0 0.0
    %302 = vmatprep.subr.mxu0 0.0
    %303 = vmatpush1.msra.mxu0 0.0
    %304 = vmatprep.subr.mxu0 0.0
    %305 = vmatpush1.msra.mxu0 0.0
    %306 = vmatprep.subr.mxu0 0.0
    %307 = vmatpush1.msra.mxu0 0.0
    %308 = vmatprep.subr.mxu0 0.0
    %309 = vmatpush1.msra.mxu0 0.0
    %310 = vmatprep.subr.mxu0 0.0
    %311 = vmatpush1.msra.mxu0 0.0
    %312 = vmatprep.subr.mxu0 0.0
    %313 = vmatpush1.msra.mxu0 0.0
    %314 = vmatprep.subr.mxu0 0.0
    %315 = vmatpush1.msra.mxu0 0.0
    %316 = vmatprep.subr.mxu0 0.0
    %317 = vmatpush1.msra.mxu0 0.0
    %318 = vmatprep.subr.mxu0 0.0
    %319 = vmatpush1.msra.mxu0 0.0
    %320 = vmatprep.subr.mxu0 0.0
    %321 = vmatpush1.msra.mxu0 0.0
    %322 = vmatprep.mubr.f32.mxu0 0.0
    %v323 = vand.u32 %v80, 4294901760
    %324 = vmatmul.mubr.f32.gmra.mrb[0].mxu0 %v323
    %v325 = vpop.f32.mrb[0].mxu0
    %v326 = vadd.f32 %v180, %v325
    %v327 = vpop.f32.mrb[0].mxu0
    %328 = vmatprep.mubr.f32.mxu0 0.0
    %v329 = vand.u32 %v83, 4294901760
    %330 = vmatmul.mubr.f32.gmra.mrb[0].mxu0 %v329
    %v331 = vpop.f32.mrb[0].mxu0
    %v332 = vadd.f32 %v190, %v331
    %v333 = vpop.f32.mrb[0].mxu0
    %334 = vmatprep.mubr.f32.mxu0 0.0
    %v335 = vand.u32 %v86, 4294901760
    %336 = vmatmul.mubr.f32.gmra.mrb[0].mxu0 %v335
    %v337 = vpop.f32.mrb[0].mxu0
    %v338 = vadd.f32 %v200, %v337
    %v339 = vpop.f32.mrb[0].mxu0
    %340 = vmatprep.mubr.f32.mxu0 0.0
    %v341 = vand.u32 %v89, 4294901760
    %342 = vmatmul.mubr.f32.gmra.mrb[0].mxu0 %v341
    %v343 = vpop.f32.mrb[0].mxu0
    %v344 = vadd.f32 %v210, %v343
    %v345 = vpop.f32.mrb[0].mxu0
    %346 = vmatprep.mubr.f32.mxu0 0.0
    %v347 = vand.u32 %v92, 4294901760
    %348 = vmatmul.mubr.f32.gmra.mrb[0].mxu0 %v347
    %v349 = vpop.f32.mrb[0].mxu0
    %v350 = vadd.f32 %v220, %v349
    %v351 = vpop.f32.mrb[0].mxu0
    %352 = vmatprep.mubr.f32.mxu0 0.0
    %v353 = vand.u32 %v95, 4294901760
    %354 = vmatmul.mubr.f32.gmra.mrb[0].mxu0 %v353
    %v355 = vpop.f32.mrb[0].mxu0
    %v356 = vadd.f32 %v230, %v355
    %v357 = vpop.f32.mrb[0].mxu0
    %358 = vmatprep.mubr.f32.mxu0 0.0
    %v359 = vand.u32 %v98, 4294901760
    %360 = vmatmul.mubr.f32.gmra.mrb[0].mxu0 %v359
    %v361 = vpop.f32.mrb[0].mxu0
    %v362 = vadd.f32 %v240, %v361
    %v363 = vpop.f32.mrb[0].mxu0
    %364 = vmatprep.mubr.f32.mxu0 0.0
    %v365 = vand.u32 %v101, 4294901760
    %366 = vmatmul.mubr.f32.gmra.mrb[0].mxu0 %v365
    %v367 = vpop.f32.mrb[0].mxu0
    %v368 = vadd.f32 %v250, %v367
    %v369 = vpop.f32.mrb[0].mxu0
    %370 = vdwg.mxu0
    %371 = vmatprep.subr.mxu0 0.0
    %v372 = vand.u32 %v105, 4294901760
    %v373 = vsub.f32 %v105, %v372
    %374 = vmatpush1.msra.mxu0 %v373
    %375 = vmatprep.subr.mxu0 0.0
    %376 = vmatpush1.msra.mxu0 0.0
    %377 = vmatprep.subr.mxu0 0.0
    %378 = vmatpush1.msra.mxu0 0.0
    %379 = vmatprep.subr.mxu0 0.0
    %380 = vmatpush1.msra.mxu0 0.0
    %381 = vmatprep.subr.mxu0 0.0
    %382 = vmatpush1.msra.mxu0 0.0
    %383 = vmatprep.subr.mxu0 0.0
    %384 = vmatpush1.msra.mxu0 0.0
    %385 = vmatprep.subr.mxu0 0.0
    %386 = vmatpush1.msra.mxu0 0.0
    %387 = vmatprep.subr.mxu0 0.0
    %388 = vmatpush1.msra.mxu0 0.0
    %389 = vmatprep.subr.mxu0 0.0
    %390 = vmatpush1.msra.mxu0 0.0
    %391 = vmatprep.subr.mxu0 0.0
    %392 = vmatpush1.msra.mxu0 0.0
    %393 = vmatprep.subr.mxu0 0.0
    %394 = vmatpush1.msra.mxu0 0.0
    %395 = vmatprep.subr.mxu0 0.0
    %396 = vmatpush1.msra.mxu0 0.0
    %397 = vmatprep.subr.mxu0 0.0
    %398 = vmatpush1.msra.mxu0 0.0
    %399 = vmatprep.subr.mxu0 0.0
    %400 = vmatpush1.msra.mxu0 0.0
    %401 = vmatprep.subr.mxu0 0.0
    %402 = vmatpush1.msra.mxu0 0.0
    %403 = vmatprep.subr.mxu0 0.0
    %404 = vmatpush1.msra.mxu0 0.0
    %405 = vmatprep.subr.mxu0 0.0
    %406 = vmatpush1.msra.mxu0 0.0
    %407 = vmatprep.subr.mxu0 0.0
    %408 = vmatpush1.msra.mxu0 0.0
    %409 = vmatprep.subr.mxu0 0.0
    %410 = vmatpush1.msra.mxu0 0.0
    %411 = vmatprep.subr.mxu0 0.0
    %412 = vmatpush1.msra.mxu0 0.0
    %413 = vmatprep.subr.mxu0 0.0
    %414 = vmatpush1.msra.mxu0 0.0
    %415 = vmatprep.subr.mxu0 0.0
    %416 = vmatpush1.msra.mxu0 0.0
    %417 = vmatprep.subr.mxu0 0.0
    %418 = vmatpush1.msra.mxu0 0.0
    %419 = vmatprep.subr.mxu0 0.0
    %420 = vmatpush1.msra.mxu0 0.0
    %421 = vmatprep.subr.mxu0 0.0
    %422 = vmatpush1.msra.mxu0 0.0
    %423 = vmatprep.subr.mxu0 0.0
    %424 = vmatpush1.msra.mxu0 0.0
    %425 = vmatprep.subr.mxu0 0.0
    %426 = vmatpush1.msra.mxu0 0.0
    %427 = vmatprep.subr.mxu0 0.0
    %428 = vmatpush1.msra.mxu0 0.0
    %429 = vmatprep.subr.mxu0 0.0
    %430 = vmatpush1.msra.mxu0 0.0
    %431 = vmatprep.subr.mxu0 0.0
    %432 = vmatpush1.msra.mxu0 0.0
    %433 = vmatprep.subr.mxu0 0.0
    %434 = vmatpush1.msra.mxu0 0.0
    %435 = vmatprep.subr.mxu0 0.0
    %436 = vmatpush1.msra.mxu0 0.0
    %437 = vmatprep.mubr.f32.mxu0 0.0
    %v438 = vand.u32 %v80, 4294901760
    %v439 = vsub.f32 %v80, %v438
    %440 = vmatmul.mubr.f32.gmra.mrb[0].mxu0 %v439
    %v441 = vpop.f32.mrb[0].mxu0
    %v442 = vadd.f32 %v326, %v441
    %v443 = vpop.f32.mrb[0].mxu0
    %444 = vmatprep.mubr.f32.mxu0 0.0
    %v445 = vand.u32 %v83, 4294901760
    %v446 = vsub.f32 %v83, %v445
    %447 = vmatmul.mubr.f32.gmra.mrb[0].mxu0 %v446
    %v448 = vpop.f32.mrb[0].mxu0
    %v449 = vadd.f32 %v332, %v448
    %v450 = vpop.f32.mrb[0].mxu0
    %451 = vmatprep.mubr.f32.mxu0 0.0
    %v452 = vand.u32 %v86, 4294901760
    %v453 = vsub.f32 %v86, %v452
    %454 = vmatmul.mubr.f32.gmra.mrb[0].mxu0 %v453
    %v455 = vpop.f32.mrb[0].mxu0
    %v456 = vadd.f32 %v338, %v455
    %v457 = vpop.f32.mrb[0].mxu0
    %458 = vmatprep.mubr.f32.mxu0 0.0
    %v459 = vand.u32 %v89, 4294901760
    %v460 = vsub.f32 %v89, %v459
    %461 = vmatmul.mubr.f32.gmra.mrb[0].mxu0 %v460
    %v462 = vpop.f32.mrb[0].mxu0
    %v463 = vadd.f32 %v344, %v462
    %v464 = vpop.f32.mrb[0].mxu0
    %465 = vmatprep.mubr.f32.mxu0 0.0
    %v466 = vand.u32 %v92, 4294901760
    %v467 = vsub.f32 %v92, %v466
    %468 = vmatmul.mubr.f32.gmra.mrb[0].mxu0 %v467
    %v469 = vpop.f32.mrb[0].mxu0
    %v470 = vadd.f32 %v350, %v469
    %v471 = vpop.f32.mrb[0].mxu0
    %472 = vmatprep.mubr.f32.mxu0 0.0
    %v473 = vand.u32 %v95, 4294901760
    %v474 = vsub.f32 %v95, %v473
    %475 = vmatmul.mubr.f32.gmra.mrb[0].mxu0 %v474
    %v476 = vpop.f32.mrb[0].mxu0
    %v477 = vadd.f32 %v356, %v476
    %v478 = vpop.f32.mrb[0].mxu0
    %479 = vmatprep.mubr.f32.mxu0 0.0
    %v480 = vand.u32 %v98, 4294901760
    %v481 = vsub.f32 %v98, %v480
    %482 = vmatmul.mubr.f32.gmra.mrb[0].mxu0 %v481
    %v483 = vpop.f32.mrb[0].mxu0
    %v484 = vadd.f32 %v362, %v483
    %v485 = vpop.f32.mrb[0].mxu0
    %486 = vmatprep.mubr.f32.mxu0 0.0
    %v487 = vand.u32 %v101, 4294901760
    %v488 = vsub.f32 %v101, %v487
    %489 = vmatmul.mubr.f32.gmra.mrb[0].mxu0 %v488
    %v490 = vpop.f32.mrb[0].mxu0
    %v491 = vadd.f32 %v368, %v490
    %v492 = vpop.f32.mrb[0].mxu0
    %493 = vdwg.mxu0
    %494 = vmatprep.subr.mxu0 0.0
    %v495 = vand.u32 %v105, 4294901760
    %496 = vmatpush1.msra.mxu0 %v495
    %497 = vmatprep.subr.mxu0 0.0
    %498 = vmatpush1.msra.mxu0 0.0
    %499 = vmatprep.subr.mxu0 0.0
    %500 = vmatpush1.msra.mxu0 0.0
    %501 = vmatprep.subr.mxu0 0.0
    %502 = vmatpush1.msra.mxu0 0.0
    %503 = vmatprep.subr.mxu0 0.0
    %504 = vmatpush1.msra.mxu0 0.0
    %505 = vmatprep.subr.mxu0 0.0
    %506 = vmatpush1.msra.mxu0 0.0
    %507 = vmatprep.subr.mxu0 0.0
    %508 = vmatpush1.msra.mxu0 0.0
    %509 = vmatprep.subr.mxu0 0.0
    %510 = vmatpush1.msra.mxu0 0.0
    %511 = vmatprep.subr.mxu0 0.0
    %512 = vmatpush1.msra.mxu0 0.0
    %513 = vmatprep.subr.mxu0 0.0
    %514 = vmatpush1.msra.mxu0 0.0
    %515 = vmatprep.subr.mxu0 0.0
    %516 = vmatpush1.msra.mxu0 0.0
    %517 = vmatprep.subr.mxu0 0.0
    %518 = vmatpush1.msra.mxu0 0.0
    %519 = vmatprep.subr.mxu0 0.0
    %520 = vmatpush1.msra.mxu0 0.0
    %521 = vmatprep.subr.mxu0 0.0
    %522 = vmatpush1.msra.mxu0 0.0
    %523 = vmatprep.subr.mxu0 0.0
    %524 = vmatpush1.msra.mxu0 0.0
    %525 = vmatprep.subr.mxu0 0.0
    %526 = vmatpush1.msra.mxu0 0.0
    %527 = vmatprep.subr.mxu0 0.0
    %528 = vmatpush1.msra.mxu0 0.0
    %529 = vmatprep.subr.mxu0 0.0
    %530 = vmatpush1.msra.mxu0 0.0
    %531 = vmatprep.subr.mxu0 0.0
    %532 = vmatpush1.msra.mxu0 0.0
    %533 = vmatprep.subr.mxu0 0.0
    %534 = vmatpush1.msra.mxu0 0.0
    %535 = vmatprep.subr.mxu0 0.0
    %536 = vmatpush1.msra.mxu0 0.0
    %537 = vmatprep.subr.mxu0 0.0
    %538 = vmatpush1.msra.mxu0 0.0
    %539 = vmatprep.subr.mxu0 0.0
    %540 = vmatpush1.msra.mxu0 0.0
    %541 = vmatprep.subr.mxu0 0.0
    %542 = vmatpush1.msra.mxu0 0.0
    %543 = vmatprep.subr.mxu0 0.0
    %544 = vmatpush1.msra.mxu0 0.0
    %545 = vmatprep.subr.mxu0 0.0
    %546 = vmatpush1.msra.mxu0 0.0
    %547 = vmatprep.subr.mxu0 0.0
    %548 = vmatpush1.msra.mxu0 0.0
    %549 = vmatprep.subr.mxu0 0.0
    %550 = vmatpush1.msra.mxu0 0.0
    %551 = vmatprep.subr.mxu0 0.0
    %552 = vmatpush1.msra.mxu0 0.0
    %553 = vmatprep.subr.mxu0 0.0
    %554 = vmatpush1.msra.mxu0 0.0
    %555 = vmatprep.subr.mxu0 0.0
    %556 = vmatpush1.msra.mxu0 0.0
    %557 = vmatprep.subr.mxu0 0.0
    %558 = vmatpush1.msra.mxu0 0.0
    %559 = vmatprep.mubr.f32.mxu0 0.0
    %v560 = vand.u32 %v80, 4294901760
    %v561 = vsub.f32 %v80, %v560
    %v562 = vand.u32 %v561, 4294901760
    %563 = vmatmul.mubr.f32.gmra.mrb[0].mxu0 %v562
    %v564 = vpop.f32.mrb[0].mxu0
    %v565 = vadd.f32 %v442, %v564
    %v566 = vpop.f32.mrb[0].mxu0
    %567 = vmatprep.mubr.f32.mxu0 0.0
    %v568 = vand.u32 %v83, 4294901760
    %v569 = vsub.f32 %v83, %v568
    %v570 = vand.u32 %v569, 4294901760
    %571 = vmatmul.mubr.f32.gmra.mrb[0].mxu0 %v570
    %v572 = vpop.f32.mrb[0].mxu0
    %v573 = vadd.f32 %v449, %v572
    %v574 = vpop.f32.mrb[0].mxu0
    %575 = vmatprep.mubr.f32.mxu0 0.0
    %v576 = vand.u32 %v86, 4294901760
    %v577 = vsub.f32 %v86, %v576
    %v578 = vand.u32 %v577, 4294901760
    %579 = vmatmul.mubr.f32.gmra.mrb[0].mxu0 %v578
    %v580 = vpop.f32.mrb[0].mxu0
    %v581 = vadd.f32 %v456, %v580
    %v582 = vpop.f32.mrb[0].mxu0
    %583 = vmatprep.mubr.f32.mxu0 0.0
    %v584 = vand.u32 %v89, 4294901760
    %v585 = vsub.f32 %v89, %v584
    %v586 = vand.u32 %v585, 4294901760
    %587 = vmatmul.mubr.f32.gmra.mrb[0].mxu0 %v586
    %v588 = vpop.f32.mrb[0].mxu0
    %v589 = vadd.f32 %v463, %v588
    %v590 = vpop.f32.mrb[0].mxu0
    %591 = vmatprep.mubr.f32.mxu0 0.0
    %v592 = vand.u32 %v92, 4294901760
    %v593 = vsub.f32 %v92, %v592
    %v594 = vand.u32 %v593, 4294901760
    %595 = vmatmul.mubr.f32.gmra.mrb[0].mxu0 %v594
    %v596 = vpop.f32.mrb[0].mxu0
    %v597 = vadd.f32 %v470, %v596
    %v598 = vpop.f32.mrb[0].mxu0
    %599 = vmatprep.mubr.f32.mxu0 0.0
    %v600 = vand.u32 %v95, 4294901760
    %v601 = vsub.f32 %v95, %v600
    %v602 = vand.u32 %v601, 4294901760
    %603 = vmatmul.mubr.f32.gmra.mrb[0].mxu0 %v602
    %v604 = vpop.f32.mrb[0].mxu0
    %v605 = vadd.f32 %v477, %v604
    %v606 = vpop.f32.mrb[0].mxu0
    %607 = vmatprep.mubr.f32.mxu0 0.0
    %v608 = vand.u32 %v98, 4294901760
    %v609 = vsub.f32 %v98, %v608
    %v610 = vand.u32 %v609, 4294901760
    %611 = vmatmul.mubr.f32.gmra.mrb[0].mxu0 %v610
    %v612 = vpop.f32.mrb[0].mxu0
    %v613 = vadd.f32 %v484, %v612
    %v614 = vpop.f32.mrb[0].mxu0
    %615 = vmatprep.mubr.f32.mxu0 0.0
    %v616 = vand.u32 %v101, 4294901760
    %v617 = vsub.f32 %v101, %v616
    %v618 = vand.u32 %v617, 4294901760
    %619 = vmatmul.mubr.f32.gmra.mrb[0].mxu0 %v618
    %v620 = vpop.f32.mrb[0].mxu0
    %v621 = vadd.f32 %v491, %v620
    %v622 = vpop.f32.mrb[0].mxu0
    %623 = vdwg.mxu0
    %624 = vmatprep.subr.mxu0 0.0
    %v625 = vand.u32 %v105, 4294901760
    %v626 = vsub.f32 %v105, %v625
    %v627 = vand.u32 %v626, 4294901760
    %628 = vmatpush1.msra.mxu0 %v627
    %629 = vmatprep.subr.mxu0 0.0
    %630 = vmatpush1.msra.mxu0 0.0
    %631 = vmatprep.subr.mxu0 0.0
    %632 = vmatpush1.msra.mxu0 0.0
    %633 = vmatprep.subr.mxu0 0.0
    %634 = vmatpush1.msra.mxu0 0.0
    %635 = vmatprep.subr.mxu0 0.0
    %636 = vmatpush1.msra.mxu0 0.0
    %637 = vmatprep.subr.mxu0 0.0
    %638 = vmatpush1.msra.mxu0 0.0
    %639 = vmatprep.subr.mxu0 0.0
    %640 = vmatpush1.msra.mxu0 0.0
    %641 = vmatprep.subr.mxu0 0.0
    %642 = vmatpush1.msra.mxu0 0.0
    %643 = vmatprep.subr.mxu0 0.0
    %644 = vmatpush1.msra.mxu0 0.0
    %645 = vmatprep.subr.mxu0 0.0
    %646 = vmatpush1.msra.mxu0 0.0
    %647 = vmatprep.subr.mxu0 0.0
    %648 = vmatpush1.msra.mxu0 0.0
    %649 = vmatprep.subr.mxu0 0.0
    %650 = vmatpush1.msra.mxu0 0.0
    %651 = vmatprep.subr.mxu0 0.0
    %652 = vmatpush1.msra.mxu0 0.0
    %653 = vmatprep.subr.mxu0 0.0
    %654 = vmatpush1.msra.mxu0 0.0
    %655 = vmatprep.subr.mxu0 0.0
    %656 = vmatpush1.msra.mxu0 0.0
    %657 = vmatprep.subr.mxu0 0.0
    %658 = vmatpush1.msra.mxu0 0.0
    %659 = vmatprep.subr.mxu0 0.0
    %660 = vmatpush1.msra.mxu0 0.0
    %661 = vmatprep.subr.mxu0 0.0
    %662 = vmatpush1.msra.mxu0 0.0
    %663 = vmatprep.subr.mxu0 0.0
    %664 = vmatpush1.msra.mxu0 0.0
    %665 = vmatprep.subr.mxu0 0.0
    %666 = vmatpush1.msra.mxu0 0.0
    %667 = vmatprep.subr.mxu0 0.0
    %668 = vmatpush1.msra.mxu0 0.0
    %669 = vmatprep.subr.mxu0 0.0
    %670 = vmatpush1.msra.mxu0 0.0
    %671 = vmatprep.subr.mxu0 0.0
    %672 = vmatpush1.msra.mxu0 0.0
    %673 = vmatprep.subr.mxu0 0.0
    %674 = vmatpush1.msra.mxu0 0.0
    %675 = vmatprep.subr.mxu0 0.0
    %676 = vmatpush1.msra.mxu0 0.0
    %677 = vmatprep.subr.mxu0 0.0
    %678 = vmatpush1.msra.mxu0 0.0
    %679 = vmatprep.subr.mxu0 0.0
    %680 = vmatpush1.msra.mxu0 0.0
    %681 = vmatprep.subr.mxu0 0.0
    %682 = vmatpush1.msra.mxu0 0.0
    %683 = vmatprep.subr.mxu0 0.0
    %684 = vmatpush1.msra.mxu0 0.0
    %685 = vmatprep.subr.mxu0 0.0
    %686 = vmatpush1.msra.mxu0 0.0
    %687 = vmatprep.subr.mxu0 0.0
    %688 = vmatpush1.msra.mxu0 0.0
    %689 = vmatprep.subr.mxu0 0.0
    %690 = vmatpush1.msra.mxu0 0.0
    %691 = vmatprep.mubr.f32.mxu0 0.0
    %v692 = vand.u32 %v80, 4294901760
    %693 = vmatmul.mubr.f32.gmra.mrb[0].mxu0 %v692
    %v694 = vpop.f32.mrb[0].mxu0
    %v695 = vadd.f32 %v565, %v694
    %v696 = vpop.f32.mrb[0].mxu0
    %697 = vmatprep.mubr.f32.mxu0 0.0
    %v698 = vand.u32 %v83, 4294901760
    %699 = vmatmul.mubr.f32.gmra.mrb[0].mxu0 %v698
    %v700 = vpop.f32.mrb[0].mxu0
    %v701 = vadd.f32 %v573, %v700
    %v702 = vpop.f32.mrb[0].mxu0
    %703 = vmatprep.mubr.f32.mxu0 0.0
    %v704 = vand.u32 %v86, 4294901760
    %705 = vmatmul.mubr.f32.gmra.mrb[0].mxu0 %v704
    %v706 = vpop.f32.mrb[0].mxu0
    %v707 = vadd.f32 %v581, %v706
    %v708 = vpop.f32.mrb[0].mxu0
    %709 = vmatprep.mubr.f32.mxu0 0.0
    %v710 = vand.u32 %v89, 4294901760
    %711 = vmatmul.mubr.f32.gmra.mrb[0].mxu0 %v710
    %v712 = vpop.f32.mrb[0].mxu0
    %v713 = vadd.f32 %v589, %v712
    %v714 = vpop.f32.mrb[0].mxu0
    %715 = vmatprep.mubr.f32.mxu0 0.0
    %v716 = vand.u32 %v92, 4294901760
    %717 = vmatmul.mubr.f32.gmra.mrb[0].mxu0 %v716
    %v718 = vpop.f32.mrb[0].mxu0
    %v719 = vadd.f32 %v597, %v718
    %v720 = vpop.f32.mrb[0].mxu0
    %721 = vmatprep.mubr.f32.mxu0 0.0
    %v722 = vand.u32 %v95, 4294901760
    %723 = vmatmul.mubr.f32.gmra.mrb[0].mxu0 %v722
    %v724 = vpop.f32.mrb[0].mxu0
    %v725 = vadd.f32 %v605, %v724
    %v726 = vpop.f32.mrb[0].mxu0
    %727 = vmatprep.mubr.f32.mxu0 0.0
    %v728 = vand.u32 %v98, 4294901760
    %729 = vmatmul.mubr.f32.gmra.mrb[0].mxu0 %v728
    %v730 = vpop.f32.mrb[0].mxu0
    %v731 = vadd.f32 %v613, %v730
    %v732 = vpop.f32.mrb[0].mxu0
    %733 = vmatprep.mubr.f32.mxu0 0.0
    %v734 = vand.u32 %v101, 4294901760
    %735 = vmatmul.mubr.f32.gmra.mrb[0].mxu0 %v734
    %v736 = vpop.f32.mrb[0].mxu0
    %v737 = vadd.f32 %v621, %v736
    %v738 = vpop.f32.mrb[0].mxu0
    %739 = vdwg.mxu0
    %740 = vmatprep.subr.mxu0 0.0
    %v741 = vand.u32 %v105, 4294901760
    %742 = vmatpush1.msra.mxu0 %v741
    %743 = vmatprep.subr.mxu0 0.0
    %744 = vmatpush1.msra.mxu0 0.0
    %745 = vmatprep.subr.mxu0 0.0
    %746 = vmatpush1.msra.mxu0 0.0
    %747 = vmatprep.subr.mxu0 0.0
    %748 = vmatpush1.msra.mxu0 0.0
    %749 = vmatprep.subr.mxu0 0.0
    %750 = vmatpush1.msra.mxu0 0.0
    %751 = vmatprep.subr.mxu0 0.0
    %752 = vmatpush1.msra.mxu0 0.0
    %753 = vmatprep.subr.mxu0 0.0
    %754 = vmatpush1.msra.mxu0 0.0
    %755 = vmatprep.subr.mxu0 0.0
    %756 = vmatpush1.msra.mxu0 0.0
    %757 = vmatprep.subr.mxu0 0.0
    %758 = vmatpush1.msra.mxu0 0.0
    %759 = vmatprep.subr.mxu0 0.0
    %760 = vmatpush1.msra.mxu0 0.0
    %761 = vmatprep.subr.mxu0 0.0
    %762 = vmatpush1.msra.mxu0 0.0
    %763 = vmatprep.subr.mxu0 0.0
    %764 = vmatpush1.msra.mxu0 0.0
    %765 = vmatprep.subr.mxu0 0.0
    %766 = vmatpush1.msra.mxu0 0.0
    %767 = vmatprep.subr.mxu0 0.0
    %768 = vmatpush1.msra.mxu0 0.0
    %769 = vmatprep.subr.mxu0 0.0
    %770 = vmatpush1.msra.mxu0 0.0
    %771 = vmatprep.subr.mxu0 0.0
    %772 = vmatpush1.msra.mxu0 0.0
    %773 = vmatprep.subr.mxu0 0.0
    %774 = vmatpush1.msra.mxu0 0.0
    %775 = vmatprep.subr.mxu0 0.0
    %776 = vmatpush1.msra.mxu0 0.0
    %777 = vmatprep.subr.mxu0 0.0
    %778 = vmatpush1.msra.mxu0 0.0
    %779 = vmatprep.subr.mxu0 0.0
    %780 = vmatpush1.msra.mxu0 0.0
    %781 = vmatprep.subr.mxu0 0.0
    %782 = vmatpush1.msra.mxu0 0.0
    %783 = vmatprep.subr.mxu0 0.0
    %784 = vmatpush1.msra.mxu0 0.0
    %785 = vmatprep.subr.mxu0 0.0
    %786 = vmatpush1.msra.mxu0 0.0
    %787 = vmatprep.subr.mxu0 0.0
    %788 = vmatpush1.msra.mxu0 0.0
    %789 = vmatprep.subr.mxu0 0.0
    %790 = vmatpush1.msra.mxu0 0.0
    %791 = vmatprep.subr.mxu0 0.0
    %792 = vmatpush1.msra.mxu0 0.0
    %793 = vmatprep.subr.mxu0 0.0
    %794 = vmatpush1.msra.mxu0 0.0
    %795 = vmatprep.subr.mxu0 0.0
    %796 = vmatpush1.msra.mxu0 0.0
    %797 = vmatprep.subr.mxu0 0.0
    %798 = vmatpush1.msra.mxu0 0.0
    %799 = vmatprep.subr.mxu0 0.0
    %800 = vmatpush1.msra.mxu0 0.0
    %801 = vmatprep.subr.mxu0 0.0
    %802 = vmatpush1.msra.mxu0 0.0
    %803 = vmatprep.subr.mxu0 0.0
    %804 = vmatpush1.msra.mxu0 0.0
    %805 = vmatprep.mubr.f32.mxu0 0.0
    %v806 = vand.u32 %v80, 4294901760
    %807 = vmatmul.mubr.f32.gmra.mrb[0].mxu0 %v806
    %v808 = vpop.f32.mrb[0].mxu0
    %v809 = vadd.f32 %v695, %v808
    %v810 = vpop.f32.mrb[0].mxu0
    %811 = vmatprep.mubr.f32.mxu0 0.0
    %v812 = vand.u32 %v83, 4294901760
    %813 = vmatmul.mubr.f32.gmra.mrb[0].mxu0 %v812
    %v814 = vpop.f32.mrb[0].mxu0
    %v815 = vadd.f32 %v701, %v814
    %v816 = vpop.f32.mrb[0].mxu0
    %817 = vmatprep.mubr.f32.mxu0 0.0
    %v818 = vand.u32 %v86, 4294901760
    %819 = vmatmul.mubr.f32.gmra.mrb[0].mxu0 %v818
    %v820 = vpop.f32.mrb[0].mxu0
    %v821 = vadd.f32 %v707, %v820
    %v822 = vpop.f32.mrb[0].mxu0
    %823 = vmatprep.mubr.f32.mxu0 0.0
    %v824 = vand.u32 %v89, 4294901760
    %825 = vmatmul.mubr.f32.gmra.mrb[0].mxu0 %v824
    %v826 = vpop.f32.mrb[0].mxu0
    %v827 = vadd.f32 %v713, %v826
    %v828 = vpop.f32.mrb[0].mxu0
    %829 = vmatprep.mubr.f32.mxu0 0.0
    %v830 = vand.u32 %v92, 4294901760
    %831 = vmatmul.mubr.f32.gmra.mrb[0].mxu0 %v830
    %v832 = vpop.f32.mrb[0].mxu0
    %v833 = vadd.f32 %v719, %v832
    %v834 = vpop.f32.mrb[0].mxu0
    %835 = vmatprep.mubr.f32.mxu0 0.0
    %v836 = vand.u32 %v95, 4294901760
    %837 = vmatmul.mubr.f32.gmra.mrb[0].mxu0 %v836
    %v838 = vpop.f32.mrb[0].mxu0
    %v839 = vadd.f32 %v725, %v838
    %v840 = vpop.f32.mrb[0].mxu0
    %841 = vmatprep.mubr.f32.mxu0 0.0
    %v842 = vand.u32 %v98, 4294901760
    %843 = vmatmul.mubr.f32.gmra.mrb[0].mxu0 %v842
    %v844 = vpop.f32.mrb[0].mxu0
    %v845 = vadd.f32 %v731, %v844
    %v846 = vpop.f32.mrb[0].mxu0
    %847 = vmatprep.mubr.f32.mxu0 0.0
    %v848 = vand.u32 %v101, 4294901760
    %849 = vmatmul.mubr.f32.gmra.mrb[0].mxu0 %v848
    %v850 = vpop.f32.mrb[0].mxu0
    %v851 = vadd.f32 %v737, %v850
    %v852 = vpop.f32.mrb[0].mxu0
    %853 = vdwg.mxu0
    %v854 = vmax.f32 %v809, 0.0
    %v855 = vmax.f32 %v815, 0.0
    %v856 = vmax.f32 %v821, 0.0
    %v857 = vmax.f32 %v827, 0.0
    %v858 = vmax.f32 %v833, 0.0
    %v859 = vmax.f32 %v839, 0.0
    %v860 = vmax.f32 %v845, 0.0
    %v861 = vmax.f32 %v851, 0.0
    %v862 = vld [vmem:[%s3] sm:$0xff]
    %v863 = vld [vmem:[%s3 + $0x8] sm:$0x1]
    %v864 = vld [vmem:[%s4] sm:$0xff]
    %v865 = vld [vmem:[%s4 + $0x8] sm:$0x1]
    %867 = vset.pattern.permute.xlu0 0
    %868 = vperm.xlu0 %867, %v864
    %v869 = vpop.permute.xlu0 %868
    %872 = vset.pattern.permute.xlu0 0
    %873 = vperm.xlu0 %872, %v865
    %v874 = vpop.permute.xlu0 %873
    %vm876 = vcmask 523264
    %v878 = vsel %vm876, %v862, 0
    %v881 = vsel %vm876, %v863, 0
    %883 = vmatprep.subr.mxu0 0.0
    %v884 = vand.u32 %v854, 4294901760
    %885 = vmatpush1.msra.mxu0 %v884
    %886 = vmatprep.subr.mxu0 0.0
    %v887 = vand.u32 %v855, 4294901760
    %888 = vmatpush1.msra.mxu0 %v887
    %889 = vmatprep.subr.mxu0 0.0
    %v890 = vand.u32 %v856, 4294901760
    %891 = vmatpush1.msra.mxu0 %v890
    %892 = vmatprep.subr.mxu0 0.0
    %v893 = vand.u32 %v857, 4294901760
    %894 = vmatpush1.msra.mxu0 %v893
    %895 = vmatprep.subr.mxu0 0.0
    %v896 = vand.u32 %v858, 4294901760
    %897 = vmatpush1.msra.mxu0 %v896
    %898 = vmatprep.subr.mxu0 0.0
    %v899 = vand.u32 %v859, 4294901760
    %900 = vmatpush1.msra.mxu0 %v899
    %901 = vmatprep.subr.mxu0 0.0
    %v902 = vand.u32 %v860, 4294901760
    %903 = vmatpush1.msra.mxu0 %v902
    %904 = vmatprep.subr.mxu0 0.0
    %v905 = vand.u32 %v861, 4294901760
    %906 = vmatpush1.msra.mxu0 %v905
    %907 = vmatprep.subr.mxu0 0.0
    %908 = vmatpush1.msra.mxu0 0.0
    %909 = vmatprep.subr.mxu0 0.0
    %910 = vmatpush1.msra.mxu0 0.0
    %911 = vmatprep.subr.mxu0 0.0
    %912 = vmatpush1.msra.mxu0 0.0
    %913 = vmatprep.subr.mxu0 0.0
    %914 = vmatpush1.msra.mxu0 0.0
    %915 = vmatprep.subr.mxu0 0.0
    %916 = vmatpush1.msra.mxu0 0.0
    %917 = vmatprep.subr.mxu0 0.0
    %918 = vmatpush1.msra.mxu0 0.0
    %919 = vmatprep.subr.mxu0 0.0
    %920 = vmatpush1.msra.mxu0 0.0
    %921 = vmatprep.subr.mxu0 0.0
    %922 = vmatpush1.msra.mxu0 0.0
    %923 = vmatprep.subr.mxu0 0.0
    %924 = vmatpush1.msra.mxu0 0.0
    %925 = vmatprep.subr.mxu0 0.0
    %926 = vmatpush1.msra.mxu0 0.0
    %927 = vmatprep.subr.mxu0 0.0
    %928 = vmatpush1.msra.mxu0 0.0
    %929 = vmatprep.subr.mxu0 0.0
    %930 = vmatpush1.msra.mxu0 0.0
    %931 = vmatprep.subr.mxu0 0.0
    %932 = vmatpush1.msra.mxu0 0.0
    %933 = vmatprep.subr.mxu0 0.0
    %934 = vmatpush1.msra.mxu0 0.0
    %935 = vmatprep.subr.mxu0 0.0
    %936 = vmatpush1.msra.mxu0 0.0
    %937 = vmatprep.subr.mxu0 0.0
    %938 = vmatpush1.msra.mxu0 0.0
    %939 = vmatprep.subr.mxu0 0.0
    %940 = vmatpush1.msra.mxu0 0.0
    %941 = vmatprep.subr.mxu0 0.0
    %942 = vmatpush1.msra.mxu0 0.0
    %943 = vmatprep.subr.mxu0 0.0
    %944 = vmatpush1.msra.mxu0 0.0
    %945 = vmatprep.subr.mxu0 0.0
    %946 = vmatpush1.msra.mxu0 0.0
    %947 = vmatprep.subr.mxu0 0.0
    %948 = vmatpush1.msra.mxu0 0.0
    %949 = vmatprep.subr.mxu0 0.0
    %950 = vmatpush1.msra.mxu0 0.0
    %951 = vmatprep.subr.mxu0 0.0
    %952 = vmatpush1.msra.mxu0 0.0
    %953 = vmatprep.subr.mxu0 0.0
    %954 = vmatpush1.msra.mxu0 0.0
    %955 = vmatprep.mubr.f32.mxu0 0.0
    %v956 = vand.u32 %v878, 4294901760
    %v957 = vsub.f32 %v878, %v956
    %v958 = vand.u32 %v957, 4294901760
    %v959 = vsub.f32 %v957, %v958
    %v960 = vand.u32 %v959, 4294901760
    %961 = vmatmul.mubr.f32.gmra.mrb[0].mxu0 %v960
    %v962 = vpop.f32.mrb[0].mxu0
    %v963 = vadd.f32 %v869, %v962
    %v964 = vpop.f32.mrb[0].mxu0
    %965 = vmatprep.mubr.f32.mxu0 0.0
    %v966 = vand.u32 %v881, 4294901760
    %v967 = vsub.f32 %v881, %v966
    %v968 = vand.u32 %v967, 4294901760
    %v969 = vsub.f32 %v967, %v968
    %v970 = vand.u32 %v969, 4294901760
    %971 = vmatmul.mubr.f32.gmra.mrb[0].mxu0 %v970
    %v972 = vpop.f32.mrb[0].mxu0
    %v973 = vadd.f32 %v874, %v972
    %v974 = vpop.f32.mrb[0].mxu0
    %975 = vdwg.mxu0
    %976 = vmatprep.subr.mxu0 0.0
    %v977 = vand.u32 %v854, 4294901760
    %v978 = vsub.f32 %v854, %v977
    %v979 = vand.u32 %v978, 4294901760
    %v980 = vsub.f32 %v978, %v979
    %v981 = vand.u32 %v980, 4294901760
    %982 = vmatpush1.msra.mxu0 %v981
    %983 = vmatprep.subr.mxu0 0.0
    %v984 = vand.u32 %v855, 4294901760
    %v985 = vsub.f32 %v855, %v984
    %v986 = vand.u32 %v985, 4294901760
    %v987 = vsub.f32 %v985, %v986
    %v988 = vand.u32 %v987, 4294901760
    %989 = vmatpush1.msra.mxu0 %v988
    %990 = vmatprep.subr.mxu0 0.0
    %v991 = vand.u32 %v856, 4294901760
    %v992 = vsub.f32 %v856, %v991
    %v993 = vand.u32 %v992, 4294901760
    %v994 = vsub.f32 %v992, %v993
    %v995 = vand.u32 %v994, 4294901760
    %996 = vmatpush1.msra.mxu0 %v995
    %997 = vmatprep.subr.mxu0 0.0
    %v998 = vand.u32 %v857, 4294901760
    %v999 = vsub.f32 %v857, %v998
    %v1000 = vand.u32 %v999, 4294901760
    %v1001 = vsub.f32 %v999, %v1000
    %v1002 = vand.u32 %v1001, 4294901760
    %1003 = vmatpush1.msra.mxu0 %v1002
    %1004 = vmatprep.subr.mxu0 0.0
    %v1005 = vand.u32 %v858, 4294901760
    %v1006 = vsub.f32 %v858, %v1005
    %v1007 = vand.u32 %v1006, 4294901760
    %v1008 = vsub.f32 %v1006, %v1007
    %v1009 = vand.u32 %v1008, 4294901760
    %1010 = vmatpush1.msra.mxu0 %v1009
    %1011 = vmatprep.subr.mxu0 0.0
    %v1012 = vand.u32 %v859, 4294901760
    %v1013 = vsub.f32 %v859, %v1012
    %v1014 = vand.u32 %v1013, 4294901760
    %v1015 = vsub.f32 %v1013, %v1014
    %v1016 = vand.u32 %v1015, 4294901760
    %1017 = vmatpush1.msra.mxu0 %v1016
    %1018 = vmatprep.subr.mxu0 0.0
    %v1019 = vand.u32 %v860, 4294901760
    %v1020 = vsub.f32 %v860, %v1019
    %v1021 = vand.u32 %v1020, 4294901760
    %v1022 = vsub.f32 %v1020, %v1021
    %v1023 = vand.u32 %v1022, 4294901760
    %1024 = vmatpush1.msra.mxu0 %v1023
    %1025 = vmatprep.subr.mxu0 0.0
    %v1026 = vand.u32 %v861, 4294901760
    %v1027 = vsub.f32 %v861, %v1026
    %v1028 = vand.u32 %v1027, 4294901760
    %v1029 = vsub.f32 %v1027, %v1028
    %v1030 = vand.u32 %v1029, 4294901760
    %1031 = vmatpush1.msra.mxu0 %v1030
    %1032 = vmatprep.subr.mxu0 0.0
    %1033 = vmatpush1.msra.mxu0 0.0
    %1034 = vmatprep.subr.mxu0 0.0
    %1035 = vmatpush1.msra.mxu0 0.0
    %1036 = vmatprep.subr.mxu0 0.0
    %1037 = vmatpush1.msra.mxu0 0.0
    %1038 = vmatprep.subr.mxu0 0.0
    %1039 = vmatpush1.msra.mxu0 0.0
    %1040 = vmatprep.subr.mxu0 0.0
    %1041 = vmatpush1.msra.mxu0 0.0
    %1042 = vmatprep.subr.mxu0 0.0
    %1043 = vmatpush1.msra.mxu0 0.0
    %1044 = vmatprep.subr.mxu0 0.0
    %1045 = vmatpush1.msra.mxu0 0.0
    %1046 = vmatprep.subr.mxu0 0.0
    %1047 = vmatpush1.msra.mxu0 0.0
    %1048 = vmatprep.subr.mxu0 0.0
    %1049 = vmatpush1.msra.mxu0 0.0
    %1050 = vmatprep.subr.mxu0 0.0
    %1051 = vmatpush1.msra.mxu0 0.0
    %1052 = vmatprep.subr.mxu0 0.0
    %1053 = vmatpush1.msra.mxu0 0.0
    %1054 = vmatprep.subr.mxu0 0.0
    %1055 = vmatpush1.msra.mxu0 0.0
    %1056 = vmatprep.subr.mxu0 0.0
    %1057 = vmatpush1.msra.mxu0 0.0
    %1058 = vmatprep.subr.mxu0 0.0
    %1059 = vmatpush1.msra.mxu0 0.0
    %1060 = vmatprep.subr.mxu0 0.0
    %1061 = vmatpush1.msra.mxu0 0.0
    %1062 = vmatprep.subr.mxu0 0.0
    %1063 = vmatpush1.msra.mxu0 0.0
    %1064 = vmatprep.subr.mxu0 0.0
    %1065 = vmatpush1.msra.mxu0 0.0
    %1066 = vmatprep.subr.mxu0 0.0
    %1067 = vmatpush1.msra.mxu0 0.0
    %1068 = vmatprep.subr.mxu0 0.0
    %1069 = vmatpush1.msra.mxu0 0.0
    %1070 = vmatprep.subr.mxu0 0.0
    %1071 = vmatpush1.msra.mxu0 0.0
    %1072 = vmatprep.subr.mxu0 0.0
    %1073 = vmatpush1.msra.mxu0 0.0
    %1074 = vmatprep.subr.mxu0 0.0
    %1075 = vmatpush1.msra.mxu0 0.0
    %1076 = vmatprep.subr.mxu0 0.0
    %1077 = vmatpush1.msra.mxu0 0.0
    %1078 = vmatprep.subr.mxu0 0.0
    %1079 = vmatpush1.msra.mxu0 0.0
    %1080 = vmatprep.mubr.f32.mxu0 0.0
    %v1081 = vand.u32 %v878, 4294901760
    %1082 = vmatmul.mubr.f32.gmra.mrb[0].mxu0 %v1081
    %v1083 = vpop.f32.mrb[0].mxu0
    %v1084 = vadd.f32 %v963, %v1083
    %v1085 = vpop.f32.mrb[0].mxu0
    %1086 = vmatprep.mubr.f32.mxu0 0.0
    %v1087 = vand.u32 %v881, 4294901760
    %1088 = vmatmul.mubr.f32.gmra.mrb[0].mxu0 %v1087
    %v1089 = vpop.f32.mrb[0].mxu0
    %v1090 = vadd.f32 %v973, %v1089
    %v1091 = vpop.f32.mrb[0].mxu0
    %1092 = vdwg.mxu0
    %1093 = vmatprep.subr.mxu0 0.0
    %v1094 = vand.u32 %v854, 4294901760
    %v1095 = vsub.f32 %v854, %v1094
    %1096 = vmatpush1.msra.mxu0 %v1095
    %1097 = vmatprep.subr.mxu0 0.0
    %v1098 = vand.u32 %v855, 4294901760
    %v1099 = vsub.f32 %v855, %v1098
    %1100 = vmatpush1.msra.mxu0 %v1099
    %1101 = vmatprep.subr.mxu0 0.0
    %v1102 = vand.u32 %v856, 4294901760
    %v1103 = vsub.f32 %v856, %v1102
    %1104 = vmatpush1.msra.mxu0 %v1103
    %1105 = vmatprep.subr.mxu0 0.0
    %v1106 = vand.u32 %v857, 4294901760
    %v1107 = vsub.f32 %v857, %v1106
    %1108 = vmatpush1.msra.mxu0 %v1107
    %1109 = vmatprep.subr.mxu0 0.0
    %v1110 = vand.u32 %v858, 4294901760
    %v1111 = vsub.f32 %v858, %v1110
    %1112 = vmatpush1.msra.mxu0 %v1111
    %1113 = vmatprep.subr.mxu0 0.0
    %v1114 = vand.u32 %v859, 4294901760
    %v1115 = vsub.f32 %v859, %v1114
    %1116 = vmatpush1.msra.mxu0 %v1115
    %1117 = vmatprep.subr.mxu0 0.0
    %v1118 = vand.u32 %v860, 4294901760
    %v1119 = vsub.f32 %v860, %v1118
    %1120 = vmatpush1.msra.mxu0 %v1119
    %1121 = vmatprep.subr.mxu0 0.0
    %v1122 = vand.u32 %v861, 4294901760
    %v1123 = vsub.f32 %v861, %v1122
    %1124 = vmatpush1.msra.mxu0 %v1123
    %1125 = vmatprep.subr.mxu0 0.0
    %1126 = vmatpush1.msra.mxu0 0.0
    %1127 = vmatprep.subr.mxu0 0.0
    %1128 = vmatpush1.msra.mxu0 0.0
    %1129 = vmatprep.subr.mxu0 0.0
    %1130 = vmatpush1.msra.mxu0 0.0
    %1131 = vmatprep.subr.mxu0 0.0
    %1132 = vmatpush1.msra.mxu0 0.0
    %1133 = vmatprep.subr.mxu0 0.0
    %1134 = vmatpush1.msra.mxu0 0.0
    %1135 = vmatprep.subr.mxu0 0.0
    %1136 = vmatpush1.msra.mxu0 0.0
    %1137 = vmatprep.subr.mxu0 0.0
    %1138 = vmatpush1.msra.mxu0 0.0
    %1139 = vmatprep.subr.mxu0 0.0
    %1140 = vmatpush1.msra.mxu0 0.0
    %1141 = vmatprep.subr.mxu0 0.0
    %1142 = vmatpush1.msra.mxu0 0.0
    %1143 = vmatprep.subr.mxu0 0.0
    %1144 = vmatpush1.msra.mxu0 0.0
    %1145 = vmatprep.subr.mxu0 0.0
    %1146 = vmatpush1.msra.mxu0 0.0
    %1147 = vmatprep.subr.mxu0 0.0
    %1148 = vmatpush1.msra.mxu0 0.0
    %1149 = vmatprep.subr.mxu0 0.0
    %1150 = vmatpush1.msra.mxu0 0.0
    %1151 = vmatprep.subr.mxu0 0.0
    %1152 = vmatpush1.msra.mxu0 0.0
    %1153 = vmatprep.subr.mxu0 0.0
    %1154 = vmatpush1.msra.mxu0 0.0
    %1155 = vmatprep.subr.mxu0 0.0
    %1156 = vmatpush1.msra.mxu0 0.0
    %1157 = vmatprep.subr.mxu0 0.0
    %1158 = vmatpush1.msra.mxu0 0.0
    %1159 = vmatprep.subr.mxu0 0.0
    %1160 = vmatpush1.msra.mxu0 0.0
    %1161 = vmatprep.subr.mxu0 0.0
    %1162 = vmatpush1.msra.mxu0 0.0
    %1163 = vmatprep.subr.mxu0 0.0
    %1164 = vmatpush1.msra.mxu0 0.0
    %1165 = vmatprep.subr.mxu0 0.0
    %1166 = vmatpush1.msra.mxu0 0.0
    %1167 = vmatprep.subr.mxu0 0.0
    %1168 = vmatpush1.msra.mxu0 0.0
    %1169 = vmatprep.subr.mxu0 0.0
    %1170 = vmatpush1.msra.mxu0 0.0
    %1171 = vmatprep.subr.mxu0 0.0
    %1172 = vmatpush1.msra.mxu0 0.0
    %1173 = vmatprep.mubr.f32.mxu0 0.0
    %v1174 = vand.u32 %v878, 4294901760
    %v1175 = vsub.f32 %v878, %v1174
    %1176 = vmatmul.mubr.f32.gmra.mrb[0].mxu0 %v1175
    %v1177 = vpop.f32.mrb[0].mxu0
    %v1178 = vadd.f32 %v1084, %v1177
    %v1179 = vpop.f32.mrb[0].mxu0
    %1180 = vmatprep.mubr.f32.mxu0 0.0
    %v1181 = vand.u32 %v881, 4294901760
    %v1182 = vsub.f32 %v881, %v1181
    %1183 = vmatmul.mubr.f32.gmra.mrb[0].mxu0 %v1182
    %v1184 = vpop.f32.mrb[0].mxu0
    %v1185 = vadd.f32 %v1090, %v1184
    %v1186 = vpop.f32.mrb[0].mxu0
    %1187 = vdwg.mxu0
    %1188 = vmatprep.subr.mxu0 0.0
    %v1189 = vand.u32 %v854, 4294901760
    %1190 = vmatpush1.msra.mxu0 %v1189
    %1191 = vmatprep.subr.mxu0 0.0
    %v1192 = vand.u32 %v855, 4294901760
    %1193 = vmatpush1.msra.mxu0 %v1192
    %1194 = vmatprep.subr.mxu0 0.0
    %v1195 = vand.u32 %v856, 4294901760
    %1196 = vmatpush1.msra.mxu0 %v1195
    %1197 = vmatprep.subr.mxu0 0.0
    %v1198 = vand.u32 %v857, 4294901760
    %1199 = vmatpush1.msra.mxu0 %v1198
    %1200 = vmatprep.subr.mxu0 0.0
    %v1201 = vand.u32 %v858, 4294901760
    %1202 = vmatpush1.msra.mxu0 %v1201
    %1203 = vmatprep.subr.mxu0 0.0
    %v1204 = vand.u32 %v859, 4294901760
    %1205 = vmatpush1.msra.mxu0 %v1204
    %1206 = vmatprep.subr.mxu0 0.0
    %v1207 = vand.u32 %v860, 4294901760
    %1208 = vmatpush1.msra.mxu0 %v1207
    %1209 = vmatprep.subr.mxu0 0.0
    %v1210 = vand.u32 %v861, 4294901760
    %1211 = vmatpush1.msra.mxu0 %v1210
    %1212 = vmatprep.subr.mxu0 0.0
    %1213 = vmatpush1.msra.mxu0 0.0
    %1214 = vmatprep.subr.mxu0 0.0
    %1215 = vmatpush1.msra.mxu0 0.0
    %1216 = vmatprep.subr.mxu0 0.0
    %1217 = vmatpush1.msra.mxu0 0.0
    %1218 = vmatprep.subr.mxu0 0.0
    %1219 = vmatpush1.msra.mxu0 0.0
    %1220 = vmatprep.subr.mxu0 0.0
    %1221 = vmatpush1.msra.mxu0 0.0
    %1222 = vmatprep.subr.mxu0 0.0
    %1223 = vmatpush1.msra.mxu0 0.0
    %1224 = vmatprep.subr.mxu0 0.0
    %1225 = vmatpush1.msra.mxu0 0.0
    %1226 = vmatprep.subr.mxu0 0.0
    %1227 = vmatpush1.msra.mxu0 0.0
    %1228 = vmatprep.subr.mxu0 0.0
    %1229 = vmatpush1.msra.mxu0 0.0
    %1230 = vmatprep.subr.mxu0 0.0
    %1231 = vmatpush1.msra.mxu0 0.0
    %1232 = vmatprep.subr.mxu0 0.0
    %1233 = vmatpush1.msra.mxu0 0.0
    %1234 = vmatprep.subr.mxu0 0.0
    %1235 = vmatpush1.msra.mxu0 0.0
    %1236 = vmatprep.subr.mxu0 0.0
    %1237 = vmatpush1.msra.mxu0 0.0
    %1238 = vmatprep.subr.mxu0 0.0
    %1239 = vmatpush1.msra.mxu0 0.0
    %1240 = vmatprep.subr.mxu0 0.0
    %1241 = vmatpush1.msra.mxu0 0.0
    %1242 = vmatprep.subr.mxu0 0.0
    %1243 = vmatpush1.msra.mxu0 0.0
    %1244 = vmatprep.subr.mxu0 0.0
    %1245 = vmatpush1.msra.mxu0 0.0
    %1246 = vmatprep.subr.mxu0 0.0
    %1247 = vmatpush1.msra.mxu0 0.0
    %1248 = vmatprep.subr.mxu0 0.0
    %1249 = vmatpush1.msra.mxu0 0.0
    %1250 = vmatprep.subr.mxu0 0.0
    %1251 = vmatpush1.msra.mxu0 0.0
    %1252 = vmatprep.subr.mxu0 0.0
    %1253 = vmatpush1.msra.mxu0 0.0
    %1254 = vmatprep.subr.mxu0 0.0
    %1255 = vmatpush1.msra.mxu0 0.0
    %1256 = vmatprep.subr.mxu0 0.0
    %1257 = vmatpush1.msra.mxu0 0.0
    %1258 = vmatprep.subr.mxu0 0.0
    %1259 = vmatpush1.msra.mxu0 0.0
    %1260 = vmatprep.mubr.f32.mxu0 0.0
    %v1261 = vand.u32 %v878, 4294901760
    %v1262 = vsub.f32 %v878, %v1261
    %v1263 = vand.u32 %v1262, 4294901760
    %1264 = vmatmul.mubr.f32.gmra.mrb[0].mxu0 %v1263
    %v1265 = vpop.f32.mrb[0].mxu0
    %v1266 = vadd.f32 %v1178, %v1265
    %v1267 = vpop.f32.mrb[0].mxu0
    %1268 = vmatprep.mubr.f32.mxu0 0.0
    %v1269 = vand.u32 %v881, 4294901760
    %v1270 = vsub.f32 %v881, %v1269
    %v1271 = vand.u32 %v1270, 4294901760
    %1272 = vmatmul.mubr.f32.gmra.mrb[0].mxu0 %v1271
    %v1273 = vpop.f32.mrb[0].mxu0
    %v1274 = vadd.f32 %v1185, %v1273
    %v1275 = vpop.f32.mrb[0].mxu0
    %1276 = vdwg.mxu0
    %1277 = vmatprep.subr.mxu0 0.0
    %v1278 = vand.u32 %v854, 4294901760
    %v1279 = vsub.f32 %v854, %v1278
    %v1280 = vand.u32 %v1279, 4294901760
    %1281 = vmatpush1.msra.mxu0 %v1280
    %1282 = vmatprep.subr.mxu0 0.0
    %v1283 = vand.u32 %v855, 4294901760
    %v1284 = vsub.f32 %v855, %v1283
    %v1285 = vand.u32 %v1284, 4294901760
    %1286 = vmatpush1.msra.mxu0 %v1285
    %1287 = vmatprep.subr.mxu0 0.0
    %v1288 = vand.u32 %v856, 4294901760
    %v1289 = vsub.f32 %v856, %v1288
    %v1290 = vand.u32 %v1289, 4294901760
    %1291 = vmatpush1.msra.mxu0 %v1290
    %1292 = vmatprep.subr.mxu0 0.0
    %v1293 = vand.u32 %v857, 4294901760
    %v1294 = vsub.f32 %v857, %v1293
    %v1295 = vand.u32 %v1294, 4294901760
    %1296 = vmatpush1.msra.mxu0 %v1295
    %1297 = vmatprep.subr.mxu0 0.0
    %v1298 = vand.u32 %v858, 4294901760
    %v1299 = vsub.f32 %v858, %v1298
    %v1300 = vand.u32 %v1299, 4294901760
    %1301 = vmatpush1.msra.mxu0 %v1300
    %1302 = vmatprep.subr.mxu0 0.0
    %v1303 = vand.u32 %v859, 4294901760
    %v1304 = vsub.f32 %v859, %v1303
    %v1305 = vand.u32 %v1304, 4294901760
    %1306 = vmatpush1.msra.mxu0 %v1305
    %1307 = vmatprep.subr.mxu0 0.0
    %v1308 = vand.u32 %v860, 4294901760
    %v1309 = vsub.f32 %v860, %v1308
    %v1310 = vand.u32 %v1309, 4294901760
    %1311 = vmatpush1.msra.mxu0 %v1310
    %1312 = vmatprep.subr.mxu0 0.0
    %v1313 = vand.u32 %v861, 4294901760
    %v1314 = vsub.f32 %v861, %v1313
    %v1315 = vand.u32 %v1314, 4294901760
    %1316 = vmatpush1.msra.mxu0 %v1315
    %1317 = vmatprep.subr.mxu0 0.0
    %1318 = vmatpush1.msra.mxu0 0.0
    %1319 = vmatprep.subr.mxu0 0.0
    %1320 = vmatpush1.msra.mxu0 0.0
    %1321 = vmatprep.subr.mxu0 0.0
    %1322 = vmatpush1.msra.mxu0 0.0
    %1323 = vmatprep.subr.mxu0 0.0
    %1324 = vmatpush1.msra.mxu0 0.0
    %1325 = vmatprep.subr.mxu0 0.0
    %1326 = vmatpush1.msra.mxu0 0.0
    %1327 = vmatprep.subr.mxu0 0.0
    %1328 = vmatpush1.msra.mxu0 0.0
    %1329 = vmatprep.subr.mxu0 0.0
    %1330 = vmatpush1.msra.mxu0 0.0
    %1331 = vmatprep.subr.mxu0 0.0
    %1332 = vmatpush1.msra.mxu0 0.0
    %1333 = vmatprep.subr.mxu0 0.0
    %1334 = vmatpush1.msra.mxu0 0.0
    %1335 = vmatprep.subr.mxu0 0.0
    %1336 = vmatpush1.msra.mxu0 0.0
    %1337 = vmatprep.subr.mxu0 0.0
    %1338 = vmatpush1.msra.mxu0 0.0
    %1339 = vmatprep.subr.mxu0 0.0
    %1340 = vmatpush1.msra.mxu0 0.0
    %1341 = vmatprep.subr.mxu0 0.0
    %1342 = vmatpush1.msra.mxu0 0.0
    %1343 = vmatprep.subr.mxu0 0.0
    %1344 = vmatpush1.msra.mxu0 0.0
    %1345 = vmatprep.subr.mxu0 0.0
    %1346 = vmatpush1.msra.mxu0 0.0
    %1347 = vmatprep.subr.mxu0 0.0
    %1348 = vmatpush1.msra.mxu0 0.0
    %1349 = vmatprep.subr.mxu0 0.0
    %1350 = vmatpush1.msra.mxu0 0.0
    %1351 = vmatprep.subr.mxu0 0.0
    %1352 = vmatpush1.msra.mxu0 0.0
    %1353 = vmatprep.subr.mxu0 0.0
    %1354 = vmatpush1.msra.mxu0 0.0
    %1355 = vmatprep.subr.mxu0 0.0
    %1356 = vmatpush1.msra.mxu0 0.0
    %1357 = vmatprep.subr.mxu0 0.0
    %1358 = vmatpush1.msra.mxu0 0.0
    %1359 = vmatprep.subr.mxu0 0.0
    %1360 = vmatpush1.msra.mxu0 0.0
    %1361 = vmatprep.subr.mxu0 0.0
    %1362 = vmatpush1.msra.mxu0 0.0
    %1363 = vmatprep.subr.mxu0 0.0
    %1364 = vmatpush1.msra.mxu0 0.0
    %1365 = vmatprep.mubr.f32.mxu0 0.0
    %v1366 = vand.u32 %v878, 4294901760
    %1367 = vmatmul.mubr.f32.gmra.mrb[0].mxu0 %v1366
    %v1368 = vpop.f32.mrb[0].mxu0
    %v1369 = vadd.f32 %v1266, %v1368
    %v1370 = vpop.f32.mrb[0].mxu0
    %1371 = vmatprep.mubr.f32.mxu0 0.0
    %v1372 = vand.u32 %v881, 4294901760
    %1373 = vmatmul.mubr.f32.gmra.mrb[0].mxu0 %v1372
    %v1374 = vpop.f32.mrb[0].mxu0
    %v1375 = vadd.f32 %v1274, %v1374
    %v1376 = vpop.f32.mrb[0].mxu0
    %1377 = vdwg.mxu0
    %1378 = vmatprep.subr.mxu0 0.0
    %v1379 = vand.u32 %v854, 4294901760
    %1380 = vmatpush1.msra.mxu0 %v1379
    %1381 = vmatprep.subr.mxu0 0.0
    %v1382 = vand.u32 %v855, 4294901760
    %1383 = vmatpush1.msra.mxu0 %v1382
    %1384 = vmatprep.subr.mxu0 0.0
    %v1385 = vand.u32 %v856, 4294901760
    %1386 = vmatpush1.msra.mxu0 %v1385
    %1387 = vmatprep.subr.mxu0 0.0
    %v1388 = vand.u32 %v857, 4294901760
    %1389 = vmatpush1.msra.mxu0 %v1388
    %1390 = vmatprep.subr.mxu0 0.0
    %v1391 = vand.u32 %v858, 4294901760
    %1392 = vmatpush1.msra.mxu0 %v1391
    %1393 = vmatprep.subr.mxu0 0.0
    %v1394 = vand.u32 %v859, 4294901760
    %1395 = vmatpush1.msra.mxu0 %v1394
    %1396 = vmatprep.subr.mxu0 0.0
    %v1397 = vand.u32 %v860, 4294901760
    %1398 = vmatpush1.msra.mxu0 %v1397
    %1399 = vmatprep.subr.mxu0 0.0
    %v1400 = vand.u32 %v861, 4294901760
    %1401 = vmatpush1.msra.mxu0 %v1400
    %1402 = vmatprep.subr.mxu0 0.0
    %1403 = vmatpush1.msra.mxu0 0.0
    %1404 = vmatprep.subr.mxu0 0.0
    %1405 = vmatpush1.msra.mxu0 0.0
    %1406 = vmatprep.subr.mxu0 0.0
    %1407 = vmatpush1.msra.mxu0 0.0
    %1408 = vmatprep.subr.mxu0 0.0
    %1409 = vmatpush1.msra.mxu0 0.0
    %1410 = vmatprep.subr.mxu0 0.0
    %1411 = vmatpush1.msra.mxu0 0.0
    %1412 = vmatprep.subr.mxu0 0.0
    %1413 = vmatpush1.msra.mxu0 0.0
    %1414 = vmatprep.subr.mxu0 0.0
    %1415 = vmatpush1.msra.mxu0 0.0
    %1416 = vmatprep.subr.mxu0 0.0
    %1417 = vmatpush1.msra.mxu0 0.0
    %1418 = vmatprep.subr.mxu0 0.0
    %1419 = vmatpush1.msra.mxu0 0.0
    %1420 = vmatprep.subr.mxu0 0.0
    %1421 = vmatpush1.msra.mxu0 0.0
    %1422 = vmatprep.subr.mxu0 0.0
    %1423 = vmatpush1.msra.mxu0 0.0
    %1424 = vmatprep.subr.mxu0 0.0
    %1425 = vmatpush1.msra.mxu0 0.0
    %1426 = vmatprep.subr.mxu0 0.0
    %1427 = vmatpush1.msra.mxu0 0.0
    %1428 = vmatprep.subr.mxu0 0.0
    %1429 = vmatpush1.msra.mxu0 0.0
    %1430 = vmatprep.subr.mxu0 0.0
    %1431 = vmatpush1.msra.mxu0 0.0
    %1432 = vmatprep.subr.mxu0 0.0
    %1433 = vmatpush1.msra.mxu0 0.0
    %1434 = vmatprep.subr.mxu0 0.0
    %1435 = vmatpush1.msra.mxu0 0.0
    %1436 = vmatprep.subr.mxu0 0.0
    %1437 = vmatpush1.msra.mxu0 0.0
    %1438 = vmatprep.subr.mxu0 0.0
    %1439 = vmatpush1.msra.mxu0 0.0
    %1440 = vmatprep.subr.mxu0 0.0
    %1441 = vmatpush1.msra.mxu0 0.0
    %1442 = vmatprep.subr.mxu0 0.0
    %1443 = vmatpush1.msra.mxu0 0.0
    %1444 = vmatprep.subr.mxu0 0.0
    %1445 = vmatpush1.msra.mxu0 0.0
    %1446 = vmatprep.subr.mxu0 0.0
    %1447 = vmatpush1.msra.mxu0 0.0
    %1448 = vmatprep.subr.mxu0 0.0
    %1449 = vmatpush1.msra.mxu0 0.0
    %1450 = vmatprep.mubr.f32.mxu0 0.0
    %v1451 = vand.u32 %v878, 4294901760
    %1452 = vmatmul.mubr.f32.gmra.mrb[0].mxu0 %v1451
    %v1453 = vpop.f32.mrb[0].mxu0
    %v1454 = vadd.f32 %v1369, %v1453
    %v1455 = vpop.f32.mrb[0].mxu0
    %1456 = vmatprep.mubr.f32.mxu0 0.0
    %v1457 = vand.u32 %v881, 4294901760
    %1458 = vmatmul.mubr.f32.gmra.mrb[0].mxu0 %v1457
    %v1459 = vpop.f32.mrb[0].mxu0
    %v1460 = vadd.f32 %v1375, %v1459
    %v1461 = vpop.f32.mrb[0].mxu0
    %1462 = vdwg.mxu0
    %1463 = vst [vmem:[#allocation2] sm:$0xff] %v1454
    %1464 = vst [vmem:[#allocation2 + $0x8] sm:$0x1] %v1460
    // Predicated region
    $region22: #{tpu_custom_call.1} parent=1 // pred_check
      _
    $region23: #{tpu_custom_call.1} parent=1 // pred_check_branch
      %1466 = sbr.rel (0) target = $region25
    $region24: #{tpu_custom_call.1} parent=1 // pred_region
      %s1468 = ssub.s32 256, 256
      %1469 = vsyncadd [#allocation3], %s1468
      %s1470 = sshll.u32 [#allocation2], 4
      %s1471 = int_to_ptr.vmem [resolvable:$true] %s1470
      %1476 = dma.vmem_to_hbm [thread:$0]  %s1471, 256, %s5, [#allocation3], 128, 128, 8
    $region25: #{tpu_custom_call.1} parent=1 // pred_fallthru
      _
    // Predicated region
    $region26: #{tpu_custom_call.1} parent=1 // pred_check
      _
    $region27: #{tpu_custom_call.1} parent=1 // pred_check_branch
      %1478 = sbr.rel (0) target = $region29
    $region28: #{tpu_custom_call.1} parent=1 // pred_region
      %1479 = dma.done [#allocation3], 256
    $region29: #{tpu_custom_call.1} parent=1 // pred_fallthru
      _
    %1480 = vsyncpa [#allocation3], 1

</llo_original>
